<compile_context>
chip_gen: v7x
topology: tpu7x:2x2x1
jax: 0.10.0
libtpu: 0.0.40
codegen_flags: <defaults>
</compile_context>

<pallas_src>
import functools

import jax
import jax.numpy as jnp
from jax.experimental import pallas as pl
from jax.experimental.pallas import tpu as pltpu

BN_EPS = 1e-5


# ---------- Pass 1: global-avg-pool + folded (fc->conv->BN) affine + ReLU ----------
def _pool_affine_kernel(x_ref, w_ref, b_ref, z_ref, acc_ref, *, inv_hw):
    k = pl.program_id(1)

    @pl.when(k == 0)
    def _():
        acc_ref[...] = jnp.zeros_like(acc_ref)

    # Partial sum over this spatial tile (lane-axis reduction).
    acc_ref[...] += jnp.sum(x_ref[...], axis=-1)            # (n_tile, C)

    @pl.when(k == pl.num_programs(1) - 1)
    def _():
        pooled = acc_ref[...] * inv_hw                       # (n_tile, C)
        z = jnp.dot(pooled, w_ref[...],
                    preferred_element_type=jnp.float32) + b_ref[...]
        z_ref[...] = jnp.maximum(z, 0.0)


# ---------- Pass 2: channel-wise gate multiply ----------
def _gate_kernel(z_ref, x_ref, o_ref):
    # z: (row_tile, 1), x/o: (row_tile, hw_tile) -> lane broadcast multiply.
    o_ref[...] = z_ref[...] * x_ref[...]


def _largest_divisor(total, base, cap):
    """Largest d with d % base == 0, total % d == 0, d <= cap; None if none."""
    best = None
    d = base
    cap = min(cap, total)
    while d <= cap:
        if total % d == 0:
            best = d
        d += base
    return best


def fca_forward(x_nchw, folded):
    """x_nchw: (N, C, H, W) float32. folded: {'w_fold': (C,C), 'b_fold': (1,C)}."""
    n, c, hgt, wid = x_nchw.shape
    hw = hgt * wid
    x3 = x_nchw.reshape(n, c, hw)        # pool-pass layout (HW lane-dense)
    x2 = x_nchw.reshape(n * c, hw)       # gate-pass layout (same bytes)
    rows = n * c

    w_fold = folded["w_fold"]            # (C, C)
    b_fold = folded["b_fold"]            # (1, C)

    # ---------------- tiling ----------------
    buf_budget_elems = (2 * 1024 * 1024) // 4      # ~2 MiB per (double-buffered) tile

    hw_tile = _largest_divisor(hw, 128, 2048) or hw

    # Pass-1 block is (n_tile, C, hw_tile); only last two dims face the (8,128) rule.
    max_n = max(1, buf_budget_elems // max(1, c * hw_tile))
    n_tile = 1
    for d in range(1, n + 1):
        if n % d == 0 and d <= max_n:
            n_tile = d

    # Pass-2 rows: multiple of 8 (or full extent), big lane tiles.
    max_rows = max(8, buf_budget_elems // max(1, hw_tile))
    row_tile = _largest_divisor(rows, 8, max_rows) or rows

    # ---------------- pass 1: z = relu(mean_hw(x) @ W + b) ----------------
    z = pl.pallas_call(
        functools.partial(_pool_affine_kernel, inv_hw=1.0 / float(hw)),
        out_shape=jax.ShapeDtypeStruct((n, c), jnp.float32),
        grid_spec=pltpu.PrefetchScalarGridSpec(
            num_scalar_prefetch=0,
            grid=(n // n_tile, hw // hw_tile),
            in_specs=[
                pl.BlockSpec((n_tile, c, hw_tile), lambda i, k: (i, 0, k)),
                pl.BlockSpec((c, c), lambda i, k: (0, 0)),
                pl.BlockSpec((1, c), lambda i, k: (0, 0)),
            ],
            out_specs=pl.BlockSpec((n_tile, c), lambda i, k: (i, 0)),
            scratch_shapes=[pltpu.VMEM((n_tile, c), jnp.float32)],
        ),
        compiler_params=pltpu.CompilerParams(
            dimension_semantics=("parallel", "arbitrary"),
            vmem_limit_bytes=32 * 1024 * 1024,
        ),
        cost_estimate=pl.CostEstimate(
            flops=2 * n * c * hw + 2 * n * c * c,
            transcendentals=0,
            bytes_accessed=n * c * hw * 4 + n * c * 4 + c * c * 4 + c * 4,
        ),
    )(x3, w_fold, b_fold)

    z2 = z.reshape(rows, 1)

    # ---------------- pass 2: out = z * x (broadcast over spatial) ----------------
    out2 = pl.pallas_call(
        _gate_kernel,
        out_shape=jax.ShapeDtypeStruct((rows, hw), jnp.float32),
        grid_spec=pltpu.PrefetchScalarGridSpec(
            num_scalar_prefetch=0,
            grid=(rows // row_tile, hw // hw_tile),
            in_specs=[
                pl.BlockSpec((row_tile, 1), lambda i, j: (i, 0)),
                pl.BlockSpec((row_tile, hw_tile), lambda i, j: (i, j)),
            ],
            out_specs=pl.BlockSpec((row_tile, hw_tile), lambda i, j: (i, j)),
        ),
        compiler_params=pltpu.CompilerParams(
            dimension_semantics=("parallel", "parallel"),
            vmem_limit_bytes=32 * 1024 * 1024,
        ),
        cost_estimate=pl.CostEstimate(
            flops=rows * hw,
            transcendentals=0,
            bytes_accessed=2 * rows * hw * 4 + rows * 4,
        ),
    )(z2, x2)

    return out2.reshape(n, c, hgt, wid)


def init_params(key, in_channels, out_channels, hidden=1000):
    k1, k2, k3, k4 = jax.random.split(key, 4)
    # PyTorch shapes: fc.weight (1000, C_in), conv.weight (C_out, 1000, 1, 1)
    w_fc = 0.02 * jax.random.normal(k1, (hidden, in_channels), jnp.float32)
    b_fc = 0.01 * jax.random.normal(k2, (hidden,), jnp.float32)
    w_conv = 0.02 * jax.random.normal(k3, (out_channels, hidden), jnp.float32)
    b_conv = 0.01 * jax.random.normal(k4, (out_channels,), jnp.float32)
    return {
        "wfc_t":   w_fc.T,                                   # (C_in, 1000)
        "bfc":     b_fc.reshape(1, hidden),
        "wconv_t": w_conv.T,                                 # (1000, C_out)
        "bconv":   b_conv.reshape(1, out_channels),
        "gamma":   jnp.ones((1, out_channels), jnp.float32),
        "beta":    jnp.zeros((1, out_channels), jnp.float32),
        "rmean":   jnp.zeros((1, out_channels), jnp.float32),
        "rvar":    jnp.ones((1, out_channels), jnp.float32),
    }


def fold_params(p):
    """Fold fc -> 1x1 conv -> inference BN into one (C_in, C_out) affine."""
    scale = p["gamma"] * jax.lax.rsqrt(p["rvar"] + BN_EPS)            # (1, C_out)
    w_comb = p["wfc_t"] @ p["wconv_t"]                                 # (C_in, C_out)
    w_fold = (w_comb * scale).astype(jnp.float32)
    b_fold = ((p["bfc"] @ p["wconv_t"] + p["bconv"] - p["rmean"]) * scale
              + p["beta"]).astype(jnp.float32)                         # (1, C_out)
    return {"w_fold": w_fold, "b_fold": b_fold}


def fca_reference(x_nchw, params):
    """Pure-JAX reference (unfolded path) for correctness checking."""
    pooled = jnp.mean(x_nchw, axis=(2, 3))                        # (N, C)
    h = pooled @ params["wfc_t"] + params["bfc"]                  # (N, 1000)
    z = h @ params["wconv_t"] + params["bconv"]                   # (N, C)
    z = (z - params["rmean"]) * jax.lax.rsqrt(params["rvar"] + BN_EPS)
    z = z * params["gamma"] + params["beta"]
    z = jnp.maximum(z, 0.0)
    return z[:, :, None, None] * x_nchw


if __name__ == "__main__":
    key = jax.random.PRNGKey(0)
    kx, kp = jax.random.split(key)

    N, C, H, W = 2, 4, 16, 16      # out_channels == in_channels (required by expand_as)
    x = jax.random.normal(kx, (N, C, H, W), jnp.float32)
    params = init_params(kp, in_channels=C, out_channels=C)
    folded = fold_params(params)

    y = fca_forward(x, folded)
    y = jax.block_until_ready(y)

    y_ref = fca_reference(x, params)
    assert y.shape == x.shape
    assert jnp.allclose(y, y_ref, rtol=1e-4, atol=1e-4), "mismatch vs reference"

    print("KERNEL_OK")
</pallas_src>

<mosaic_0001>
module attributes {stable_mosaic.version = 11 : i64} {
  func.func @_pool_affine_kernel(%arg0: i32, %arg1: i32, %arg2: memref<2x4x256xf32, #tpu.memory_space<vmem>>, %arg3: memref<4x4xf32, #tpu.memory_space<vmem>>, %arg4: memref<1x4xf32, #tpu.memory_space<vmem>>, %arg5: memref<2x4xf32, #tpu.memory_space<vmem>>, %arg6: memref<2x4xf32, #tpu.memory_space<vmem>>) attributes {dimension_semantics = [#tpu.dimension_semantics<parallel>, #tpu.dimension_semantics<arbitrary>], iteration_bounds = array<i64: 1, 1>, scalar_prefetch = 0 : i64, scratch_operands = 1 : i64, tpu.core_type = #tpu.core_type<tc>, window_params = [{transform_indices = @transform_0, window_bounds = array<i64: 2, 4, 256>}, {pipeline_mode = #tpu.pipeline_mode<synchronous>, transform_indices = @transform_1, window_bounds = array<i64: 4, 4>}, {pipeline_mode = #tpu.pipeline_mode<synchronous>, transform_indices = @transform_2, window_bounds = array<i64: 1, 4>}, {transform_indices = @transform_3, window_bounds = array<i64: 2, 4>}]} {
    %c0_i32 = arith.constant 0 : i32
    %0 = arith.cmpi eq, %arg1, %c0_i32 : i32
    %1 = arith.extui %0 : i1 to i32
    %c0_i32_0 = arith.constant 0 : i32
    %2 = arith.cmpi ne, %1, %c0_i32_0 : i32
    scf.if %2 {
      %cst_9 = arith.constant 0.000000e+00 : f32
      %11 = vector.broadcast %cst_9 : f32 to vector<2x4xf32>
      %c0_10 = arith.constant 0 : index
      %c0_11 = arith.constant 0 : index
      %12 = vector.load %arg6[%c0_10, %c0_11] : memref<2x4xf32, #tpu.memory_space<vmem>>, vector<2x4xf32>
      tpu.vector_store %arg6[%c0_10, %c0_11], %11 {strides = array<i32>} : memref<2x4xf32, #tpu.memory_space<vmem>>, vector<2x4xf32>,
    } else {
    }
    %c0 = arith.constant 0 : index
    %c0_1 = arith.constant 0 : index
    %3 = vector.load %arg6[%c0, %c0_1] : memref<2x4xf32, #tpu.memory_space<vmem>>, vector<2x4xf32>
    %c0_2 = arith.constant 0 : index
    %c0_3 = arith.constant 0 : index
    %c0_4 = arith.constant 0 : index
    %4 = vector.load %arg2[%c0_2, %c0_3, %c0_4] : memref<2x4x256xf32, #tpu.memory_space<vmem>>, vector<2x4x256xf32>
    %cst = arith.constant dense<0.000000e+00> : vector<2x4xf32>
    %5 = vector.multi_reduction <add>, %4, %cst [2] : vector<2x4x256xf32> to vector<2x4xf32>
    %6 = arith.addf %3, %5 : vector<2x4xf32>
    %c0_5 = arith.constant 0 : index
    %c0_6 = arith.constant 0 : index
    %7 = vector.load %arg6[%c0_5, %c0_6] : memref<2x4xf32, #tpu.memory_space<vmem>>, vector<2x4xf32>
    tpu.vector_store %arg6[%c0_5, %c0_6], %6 {strides = array<i32>} : memref<2x4xf32, #tpu.memory_space<vmem>>, vector<2x4xf32>,
    %c0_i32_7 = arith.constant 0 : i32
    %8 = arith.cmpi eq, %arg1, %c0_i32_7 : i32
    %9 = arith.extui %8 : i1 to i32
    %c0_i32_8 = arith.constant 0 : i32
    %10 = arith.cmpi ne, %9, %c0_i32_8 : i32
    scf.if %10 {
      %c0_9 = arith.constant 0 : index
      %c0_10 = arith.constant 0 : index
      %11 = vector.load %arg6[%c0_9, %c0_10] : memref<2x4xf32, #tpu.memory_space<vmem>>, vector<2x4xf32>
      %cst_11 = arith.constant 3.906250e-03 : f32
      %12 = vector.broadcast %cst_11 : f32 to vector<2x4xf32>
      %13 = arith.mulf %11, %12 : vector<2x4xf32>
      %c0_12 = arith.constant 0 : index
      %c0_13 = arith.constant 0 : index
      %14 = vector.load %arg3[%c0_12, %c0_13] : memref<4x4xf32, #tpu.memory_space<vmem>>, vector<4x4xf32>
      %cst_14 = arith.constant dense<0.000000e+00> : vector<2x4xf32>
      %15 = tpu.matmul %13, %14, %cst_14 {dimension_numbers = #tpu.dot_dimension_numbers<[1], [0], [0], [1], [0, 0, 1, 1], [], []>} : vector<2x4xf32>, vector<4x4xf32>, vector<2x4xf32> -> vector<2x4xf32>
      %c0_15 = arith.constant 0 : index
      %c0_16 = arith.constant 0 : index
      %16 = vector.load %arg4[%c0_15, %c0_16] : memref<1x4xf32, #tpu.memory_space<vmem>>, vector<1x4xf32>
      %17 = vector.broadcast %16 : vector<1x4xf32> to vector<2x4xf32>
      %18 = arith.addf %15, %17 : vector<2x4xf32>
      %cst_17 = arith.constant 0.000000e+00 : f32
      %19 = vector.broadcast %cst_17 : f32 to vector<2x4xf32>
      %20 = arith.maximumf %18, %19 : vector<2x4xf32>
      %c0_18 = arith.constant 0 : index
      %c0_19 = arith.constant 0 : index
      %21 = vector.load %arg5[%c0_18, %c0_19] : memref<2x4xf32, #tpu.memory_space<vmem>>, vector<2x4xf32>
      tpu.vector_store %arg5[%c0_18, %c0_19], %20 {strides = array<i32>} : memref<2x4xf32, #tpu.memory_space<vmem>>, vector<2x4xf32>,
    } else {
    }
    return
  }
  func.func @transform_0(%arg0: i32, %arg1: i32) -> (i32, i32, i32) {
    %c0_i32 = arith.constant 0 : i32
    %c0_i32_0 = arith.constant 0 : i32
    return %arg0, %c0_i32, %arg1 : i32, i32, i32
  }
  func.func @transform_1(%arg0: i32, %arg1: i32) -> (i32, i32) {
    %c0_i32 = arith.constant 0 : i32
    %c0_i32_0 = arith.constant 0 : i32
    %c0_i32_1 = arith.constant 0 : i32
    return %c0_i32, %c0_i32_0 : i32, i32
  }
  func.func @transform_2(%arg0: i32, %arg1: i32) -> (i32, i32) {
    %c0_i32 = arith.constant 0 : i32
    %c0_i32_0 = arith.constant 0 : i32
    %c0_i32_1 = arith.constant 0 : i32
    return %c0_i32, %c0_i32_0 : i32, i32
  }
  func.func @transform_3(%arg0: i32, %arg1: i32) -> (i32, i32) {
    %c0_i32 = arith.constant 0 : i32
    %c0_i32_0 = arith.constant 0 : i32
    return %arg0, %c0_i32 : i32, i32
  }
}

</mosaic_0001>

<llo_original>
// kernel: tpu_custom_call.1
$region0: #{tpu_custom_call.1}
  #allocation0 [shape = 'u32[]', space=smem, size = 0x4, offset = 0x4, fixed_abs, tag = 'smem constant byte address 0x4 - core index']
  #allocation1 [shape = 'u32[144,128]{1,0:T(1,128)}', space=vmem, size = 0x12000, scoped, tag = 'internal scratch']
  #allocation2 [shape = 'f32[2,4]{1,0:T(2,128)}', space=vmem, size = 0x400, scoped, tag = 'scratch operand']
  %s0 = inlined_call_operand.hbm [shape: f32[2,4,256], index: 0, kind: input, shape index: {}]
  %s1 = inlined_call_operand.hbm [shape: f32[4,4], index: 1, kind: input, shape index: {}]
  %s2 = inlined_call_operand.vmem [shape: f32[1,4], index: 2, kind: input, shape index: {}]
  %s3 = inlined_call_operand.hbm [shape: f32[2,4], index: 3, kind: output, shape index: {}]
  %s4 = sld [smem:[#allocation0]]
  $region38: #{tpu_custom_call.1} parent=0
    _
  %s6 = ssub.s32 1, %s4
  %s7 = scalar_select 0, %s6, %s4
  $region1: #{tpu_custom_call.1} parent=0
    #allocation3 [shape = 'u8[8192]{0}', space=vmem, size = 0x2000, scoped, tag = 'input window, operand 0, single buffered']
    #allocation4 [shape = 's32[1]{0}', space=sflag, size = 0x4, scoped, tag = 'scoped memory for tpu_custom_call.1']
    #allocation5 [shape = 's32[1]{0}', space=sflag, size = 0x4, scoped, tag = 'scoped memory for tpu_custom_call.1']
    #allocation6 [shape = 'u8[2048]{0}', space=vmem, size = 0x800, scoped, tag = 'input window, operand 1, single buffered']
    #allocation7 [shape = 's32[1]{0}', space=sflag, size = 0x4, scoped, tag = 'scoped memory for tpu_custom_call.1']
    #allocation8 [shape = 'u8[1024]{0}', space=vmem, size = 0x400, scoped, tag = 'output window, operand 0, single buffered']
    %8 = vsyncpa [#allocation4], 0
    %9 = vsyncpa [#allocation7], 0
    %10 = vsyncpa [#allocation5], 0
    // Predicated region
    $region2: #{tpu_custom_call.1} parent=1 // pred_check
      _
    $region3: #{tpu_custom_call.1} parent=1 // pred_check_branch
      %12 = sbr.rel (0) target = $region5
    $region4: #{tpu_custom_call.1} parent=1 // pred_region
      %s14 = ssub.s32 256, 256
      %15 = vsyncadd [#allocation4], %s14
      %s16 = sshll.u32 [#allocation3], 4
      %s17 = int_to_ptr.vmem [resolvable:$true] %s16
      %22 = dma.hbm_to_vmem [thread:$0]  %s0, 256, %s17, [#allocation4], 128, 128, 8
    $region5: #{tpu_custom_call.1} parent=1 // pred_fallthru
      _
    // Predicated region
    $region6: #{tpu_custom_call.1} parent=1 // pred_check
      _
    $region7: #{tpu_custom_call.1} parent=1 // pred_check_branch
      %24 = sbr.rel (0) target = $region9
    $region8: #{tpu_custom_call.1} parent=1 // pred_region
      %s26 = ssub.s32 64, 64
      %27 = vsyncadd [#allocation7], %s26
      %s29 = sshll.u32 [#allocation6], 4
      %s30 = int_to_ptr.vmem [resolvable:$true] %s29
      %32 = dma.hbm_to_vmem [thread:$0]  %s1, 64, %s30, [#allocation7]
    $region9: #{tpu_custom_call.1} parent=1 // pred_fallthru
      _
    // Predicated region
    $region10: #{tpu_custom_call.1} parent=1 // pred_check
      _
    $region11: #{tpu_custom_call.1} parent=1 // pred_check_branch
      %34 = sbr.rel (0) target = $region13
    $region12: #{tpu_custom_call.1} parent=1 // pred_region
      _
    $region13: #{tpu_custom_call.1} parent=1 // pred_fallthru
      _
    // Predicated region
    $region14: #{tpu_custom_call.1} parent=1 // pred_check
      _
    $region15: #{tpu_custom_call.1} parent=1 // pred_check_branch
      %36 = sbr.rel (0) target = $region17
    $region16: #{tpu_custom_call.1} parent=1 // pred_region
      %37 = dma.done [#allocation4], 256
    $region17: #{tpu_custom_call.1} parent=1 // pred_fallthru
      _
    // Predicated region
    $region18: #{tpu_custom_call.1} parent=1 // pred_check
      _
    $region19: #{tpu_custom_call.1} parent=1 // pred_check_branch
      %39 = sbr.rel (0) target = $region21
    $region20: #{tpu_custom_call.1} parent=1 // pred_region
      %40 = dma.done [#allocation7], 64
    $region21: #{tpu_custom_call.1} parent=1 // pred_fallthru
      _
    %p41 = scmp.eq.s32.totalorder 0, 0
    // Predicated region
    $region22: #{tpu_custom_call.1} parent=1 // pred_check
      %p42 = pneg %p41
    $region23: #{tpu_custom_call.1} parent=1 // pred_check_branch
      %44 = sbr.rel (%p42) target = $region25
    $region24: #{tpu_custom_call.1} parent=1 // pred_region
      %vm45 = vcmask 25600
      %46 = vst.msk [vmem:[#allocation2] sm:$0x3] %vm45, 0.0
    $region25: #{tpu_custom_call.1} parent=1 // pred_fallthru
      _
    %v47 = vld [vmem:[#allocation2] sm:$0x3]
    %v48 = vld [vmem:[#allocation3] sm:$0xff]
    %v49 = vld [vmem:[#allocation3 + $0x8] sm:$0xff]
    %v52 = vcombine.high %v48, %v48
    %v53 = vcombine.high %v49, %v49
    %vm56 = vcmask 1043456
    %v57 = vsel %vm56, %v48, 0.0
    %v58 = vsel %vm56, %v52, 0.0
    %v59 = vadd.f32 %v57, %v58
    %60 = vadd.xlane.f32.xlu0 %v59
    %v61 = vpop.xlane.xlu0 %60
    %v62 = vsel %vm56, %v49, 0.0
    %v63 = vsel %vm56, %v53, 0.0
    %v64 = vadd.f32 %v62, %v63
    %65 = vadd.xlane.f32.xlu0 %v64
    %v66 = vpop.xlane.xlu0 %65
    %v69 = vlaneseq
    %v70 = vand.u32 %v69, 127
    %v71 = vlaneseq
    %v72 = vshrl.u32 %v71, 7
    %v73 = vsub.s32 %v70, %v72
    %v74 = vrot.slane %v61, %v73
    %v75 = vlaneseq
    %v76 = vshrl.u32 %v75, 7
    %v77 = vsub.s32 %v70, %v76
    %v78 = vrot.slane %v66, %v77
    %vm79 = vcmask 1041409
    %v80 = vsel %vm79, %v78, %v74
    %v82 = vadd.f32 %v47, %v80
    %vm83 = vcmask 25600
    %84 = vst.msk [vmem:[#allocation2] sm:$0x3] %vm83, %v82
    // Predicated region
    $region26: #{tpu_custom_call.1} parent=1 // pred_check
      %p85 = pneg %p41
    $region27: #{tpu_custom_call.1} parent=1 // pred_check_branch
      %87 = sbr.rel (%p85) target = $region29
    $region28: #{tpu_custom_call.1} parent=1 // pred_region
      %v88 = vld [vmem:[#allocation2] sm:$0x3]
      %v89 = vmul.f32 %v88, 0.00390625
      %v90 = vld [vmem:[#allocation6] sm:$0xf]
      %v91 = vld [vmem:[%s2] sm:$0x1]
      %v93 = vlaneseq
      %v94 = vshrl.u32 %v93, 7
      %v95 = vsub.s32 0, %v94
      %v96 = vrot.slane %v91, %v95
      %vm98 = vcmask 31744
      %v100 = vsel %vm98, %v89, 0
      %v103 = vsel %vm56, %v90, 0
      %105 = vmatprep.subr.mxu0 0.0
      %106 = vmatpush1.msra.mxu0 %v103
      %107 = vmatprep.subr.mxu0 0.0
      %108 = vmatpush1.msra.mxu0 0.0
      %109 = vmatprep.subr.mxu0 0.0
      %110 = vmatpush1.msra.mxu0 0.0
      %111 = vmatprep.subr.mxu0 0.0
      %112 = vmatpush1.msra.mxu0 0.0
      %113 = vmatprep.subr.mxu0 0.0
      %114 = vmatpush1.msra.mxu0 0.0
      %115 = vmatprep.subr.mxu0 0.0
      %116 = vmatpush1.msra.mxu0 0.0
      %117 = vmatprep.subr.mxu0 0.0
      %118 = vmatpush1.msra.mxu0 0.0
      %119 = vmatprep.subr.mxu0 0.0
      %120 = vmatpush1.msra.mxu0 0.0
      %121 = vmatprep.subr.mxu0 0.0
      %122 = vmatpush1.msra.mxu0 0.0
      %123 = vmatprep.subr.mxu0 0.0
      %124 = vmatpush1.msra.mxu0 0.0
      %125 = vmatprep.subr.mxu0 0.0
      %126 = vmatpush1.msra.mxu0 0.0
      %127 = vmatprep.subr.mxu0 0.0
      %128 = vmatpush1.msra.mxu0 0.0
      %129 = vmatprep.subr.mxu0 0.0
      %130 = vmatpush1.msra.mxu0 0.0
      %131 = vmatprep.subr.mxu0 0.0
      %132 = vmatpush1.msra.mxu0 0.0
      %133 = vmatprep.subr.mxu0 0.0
      %134 = vmatpush1.msra.mxu0 0.0
      %135 = vmatprep.subr.mxu0 0.0
      %136 = vmatpush1.msra.mxu0 0.0
      %137 = vmatprep.subr.mxu0 0.0
      %138 = vmatpush1.msra.mxu0 0.0
      %139 = vmatprep.subr.mxu0 0.0
      %140 = vmatpush1.msra.mxu0 0.0
      %141 = vmatprep.subr.mxu0 0.0
      %142 = vmatpush1.msra.mxu0 0.0
      %143 = vmatprep.subr.mxu0 0.0
      %144 = vmatpush1.msra.mxu0 0.0
      %145 = vmatprep.subr.mxu0 0.0
      %146 = vmatpush1.msra.mxu0 0.0
      %147 = vmatprep.subr.mxu0 0.0
      %148 = vmatpush1.msra.mxu0 0.0
      %149 = vmatprep.subr.mxu0 0.0
      %150 = vmatpush1.msra.mxu0 0.0
      %151 = vmatprep.subr.mxu0 0.0
      %152 = vmatpush1.msra.mxu0 0.0
      %153 = vmatprep.subr.mxu0 0.0
      %154 = vmatpush1.msra.mxu0 0.0
      %155 = vmatprep.subr.mxu0 0.0
      %156 = vmatpush1.msra.mxu0 0.0
      %157 = vmatprep.subr.mxu0 0.0
      %158 = vmatpush1.msra.mxu0 0.0
      %159 = vmatprep.subr.mxu0 0.0
      %160 = vmatpush1.msra.mxu0 0.0
      %161 = vmatprep.subr.mxu0 0.0
      %162 = vmatpush1.msra.mxu0 0.0
      %163 = vmatprep.subr.mxu0 0.0
      %164 = vmatpush1.msra.mxu0 0.0
      %165 = vmatprep.subr.mxu0 0.0
      %166 = vmatpush1.msra.mxu0 0.0
      %167 = vmatprep.subr.mxu0 0.0
      %168 = vmatpush1.msra.mxu0 0.0
      %169 = vmatprep.mubr.f32.mxu0 0.0
      %170 = vmatmul.mubr.f32.gmra.mrb[0].mxu0 %v100
      %v171 = vpop.f32.mrb[0].mxu0
      %v172 = vadd.f32 %v96, %v171
      %v173 = vpop.f32.mrb[0].mxu0
      %174 = vdwg.mxu0
      %v175 = vmax.f32 %v172, 0.0
      %176 = vst.msk [vmem:[#allocation8] sm:$0x3] %vm83, %v175
    $region29: #{tpu_custom_call.1} parent=1 // pred_fallthru
      _
    // Predicated region
    $region30: #{tpu_custom_call.1} parent=1 // pred_check
      _
    $region31: #{tpu_custom_call.1} parent=1 // pred_check_branch
      %178 = sbr.rel (0) target = $region33
    $region32: #{tpu_custom_call.1} parent=1 // pred_region
      %s180 = ssub.s32 32, 32
      %181 = vsyncadd [#allocation5], %s180
      %s183 = sshll.u32 [#allocation8], 4
      %s184 = int_to_ptr.vmem [resolvable:$true] %s183
      %186 = dma.vmem_to_hbm [thread:$0]  %s184, 32, %s3, [#allocation5]
    $region33: #{tpu_custom_call.1} parent=1 // pred_fallthru
      _
    // Predicated region
    $region34: #{tpu_custom_call.1} parent=1 // pred_check
      _
    $region35: #{tpu_custom_call.1} parent=1 // pred_check_branch
      %188 = sbr.rel (0) target = $region37
    $region36: #{tpu_custom_call.1} parent=1 // pred_region
      %189 = dma.done [#allocation5], 32
    $region37: #{tpu_custom_call.1} parent=1 // pred_fallthru
      _
    %190 = vsyncpa [#allocation4], 1
    %191 = vsyncpa [#allocation7], 1
    %192 = vsyncpa [#allocation5], 1

</llo_original>
